<compile_context>
chip_gen: v5e
topology: v5e:2x2
jax: 0.10.0
libtpu: 0.0.40
codegen_flags: <defaults>
</compile_context>

<pallas_src>
import functools
from copy import deepcopy

import jax
import jax.numpy as jnp
from jax import lax
from jax.experimental import pallas as pl
from jax.experimental.pallas import tpu as pltpu


_LANE_C = 512                  # lane-dense slab width (multiple of 128)
_TARGET_TILE_BYTES = 4 << 20   # ~4 MiB per input block (x2 for double buffering)
_VMEM_LIMIT_BYTES = 32 << 20   # explicit: above v5e's 16 MiB default, <= v7x's 64 MiB/TC


def _cdiv(a: int, b: int) -> int:
    return -(-a // b)


def _round_up(a: int, b: int) -> int:
    return _cdiv(a, b) * b


# ----------------------------------------------------------------------------
# Generic "sum of elementwise fn" streaming reduction kernel
# ----------------------------------------------------------------------------
def _sum_reduce_kernel(x_ref, o_ref, *, elem_fn, steps_total, rows_in_last,
                       needs_row_mask):
    s = pl.program_id(0)   # reduction axis ("arbitrary")

    @pl.when(s == 0)
    def _():
        o_ref[...] = jnp.zeros_like(o_ref)

    val = elem_fn(x_ref[...].astype(jnp.float32))   # elementwise map (VPU / EUP)

    if needs_row_mask:
        # Only the final (partial) block carries garbage rows past the end of
        # the array -> keep the iota/compare/select off the hot full blocks.
        @pl.when(s < steps_total - 1)
        def _():
            o_ref[...] += jnp.sum(val, axis=0, keepdims=True)

        @pl.when(s == steps_total - 1)
        def _():
            rid = lax.broadcasted_iota(jnp.int32, val.shape, 0)  # row-granular: no overflow
            o_ref[...] += jnp.sum(jnp.where(rid < rows_in_last, val, 0.0),
                                  axis=0, keepdims=True)
    else:
        o_ref[...] += jnp.sum(val, axis=0, keepdims=True)


def _mean_of(elem_fn, x, *, transcendentals_per_elem=1, flops_per_elem=4,
             tile_bytes=_TARGET_TILE_BYTES):
    """Compute mean(elem_fn(x)) over all elements of x with a Pallas kernel."""
    x = jnp.asarray(x)                     # bf16 / f32 both fine; kernel upcasts
    n = int(x.size)
    assert n > 0, "SparsityLoss: empty sample array"
    itemsize = jnp.dtype(x.dtype).itemsize

    C = _LANE_C
    row_align = max(8, 32 // itemsize)     # sublane packing: 8 f32, 16 bf16, 32 int8

    R = _cdiv(n, C)
    col_pad = R * C - n                    # < C elements
    xf = x.reshape(-1)
    if col_pad:
        # Tiny pad (< one lane row) just to complete the last row; padded zeros
        # are removed analytically below, so no in-kernel flat-index mask.
        # TODO(synk): a fully zero-copy tail (separate edge DMA) would avoid
        #             even this small pad-copy for ragged sizes.
        xf = jnp.pad(xf, (0, col_pad))
    x2 = xf.reshape(R, C)                  # free reshape when col_pad == 0

    # Row tile sized by BYTES (not rows), rounded to the dtype's sublane packing.
    tile_rows = (tile_bytes // (C * itemsize)) // row_align * row_align
    tile_rows = max(row_align, min(tile_rows, _round_up(R, row_align)))
    steps_total = _cdiv(R, tile_rows)
    rows_in_last = R - (steps_total - 1) * tile_rows
    needs_row_mask = rows_in_last != tile_rows   # compile-time

    kernel = functools.partial(
        _sum_reduce_kernel,
        elem_fn=elem_fn,
        steps_total=steps_total,
        rows_in_last=rows_in_last,
        needs_row_mask=needs_row_mask,
    )

    lane_sums = pl.pallas_call(
        kernel,
        out_shape=jax.ShapeDtypeStruct((1, C), jnp.float32),
        grid_spec=pltpu.PrefetchScalarGridSpec(
            num_scalar_prefetch=0,
            grid=(steps_total,),
            in_specs=[pl.BlockSpec((tile_rows, C), lambda s: (s, 0))],
            out_specs=pl.BlockSpec((1, C), lambda s: (0, 0)),  # resident accumulator
        ),
        compiler_params=pltpu.CompilerParams(
            dimension_semantics=("arbitrary",),
            vmem_limit_bytes=_VMEM_LIMIT_BYTES,
        ),
        cost_estimate=pl.CostEstimate(
            flops=flops_per_elem * R * C,
            transcendentals=transcendentals_per_elem * R * C,
            bytes_accessed=R * C * itemsize + C * 4,
        ),
    )(x2)

    total = jnp.sum(lane_sums)             # single tiny cross-lane reduce
    if col_pad:
        # Padded columns were true zeros -> each contributed elem_fn(0) exactly.
        total = total - col_pad * elem_fn(jnp.zeros((), jnp.float32))
    return total * (1.0 / float(n))


# ----------------------------------------------------------------------------
# The three sparsity loss flavours (each a Pallas-backed mean reduction)
# ----------------------------------------------------------------------------
def fn_normal(x, std: float = 1.0):
    # torch.exp(-x ** std).mean()
    std_f = float(std)
    if std_f == 1.0:
        elem = lambda v: jnp.exp(-v)                          # 1 EUP op / elem
        trans = 1
    elif std_f.is_integer():
        k = int(std_f)
        elem = lambda v: jnp.exp(-lax.integer_pow(v, k))      # multiply chain + exp
        trans = 1
    else:
        # Genuinely non-integer exponent: exp(std*log(v)); NaN for v<0 matches
        # torch.pow semantics for a negative base with a non-integer exponent.
        elem = lambda v: jnp.exp(-jnp.exp(std_f * jnp.log(v)))
        trans = 3
    return _mean_of(elem, x, transcendentals_per_elem=trans, flops_per_elem=3)


def fn_nld(x, inv_scale: float = 16.0):
    # normalized_logistic_density(x, inv_s).mean()
    #   4*sigmoid(z)*(1-sigmoid(z)) == 1 - tanh(z/2)**2   -> single EUP op / elem
    half_s = 0.5 * float(inv_scale)

    def elem(v):
        t = jnp.tanh(half_s * v)
        return 1.0 - t * t

    return _mean_of(elem, x, transcendentals_per_elem=1, flops_per_elem=4)


def fn_density_reg(x, lamb: float = 0.05):
    # (1 - (-lamb * x).exp()).abs().mean()
    lam = float(lamb)
    return _mean_of(lambda v: jnp.abs(1.0 - jnp.exp(-lam * v)), x,
                    transcendentals_per_elem=1, flops_per_elem=4)


# ----------------------------------------------------------------------------
# Module-level wrapper mirroring SparsityLoss.forward
# ----------------------------------------------------------------------------
class SparsityLoss:
    def __init__(self, class_name_cfgs=None, drawable_class_names=(), enable_after=0):
        self.class_name_cfgs = dict(class_name_cfgs or {})
        self.enable_after = enable_after

    def __call__(self, ret, uniform_samples, it: int):
        if it < self.enable_after:
            return {}
        ret_losses = {}
        # TODO(synk): fuse the per-class reductions into one pallas_call (or at
        #             least one jit) via a scalar-prefetched class/offset table;
        #             kept separate here for arbitrary per-class configs.
        for _, obj_raw_ret in ret["raw_per_obj_model"].items():
            if obj_raw_ret["volume_buffer"]["type"] == "empty":
                continue
            class_name = obj_raw_ret["class_name"]
            if class_name not in self.class_name_cfgs:
                continue
            config = deepcopy(self.class_name_cfgs[class_name])
            w = config.pop("w", None)
            # TODO(synk): annealing schedule (get_anneal_val) not reproduced; uses constant w.
            config.pop("anneal", None)
            assert w is not None
            assert class_name in uniform_samples
            val = uniform_samples[class_name][config.pop("key", "sdf")]
            fn_type = config.pop("type", "normalized_logistic_density")
            if fn_type == "normal":
                loss = fn_normal(val, **config)
            elif fn_type == "normalized_logistic_density":
                loss = fn_nld(val, **config)
            elif fn_type == "density_reg":
                loss = fn_density_reg(val, **config)
            else:
                raise RuntimeError(f"Invalid type={fn_type}")
            ret_losses[f"loss_sparsity.{class_name}"] = w * loss
        return ret_losses


# ----------------------------------------------------------------------------
# Demo / self-check
# ----------------------------------------------------------------------------
if __name__ == "__main__":
    key = jax.random.PRNGKey(0)
    k1, k2, k3, k4 = jax.random.split(key, 4)

    R, C = 64, 256  # small synthetic sample grid [R, C]
    street_sdf = jax.random.normal(k1, (R, C), jnp.float32) * 0.5
    distant_sigma = jnp.abs(jax.random.normal(k2, (R, C), jnp.float32)) * 5.0
    dynamic_sdf = jax.random.normal(k3, (R, C), jnp.float32)

    uniform_samples = {
        "Street": {"sdf": street_sdf},
        "Distant": {"sigma": distant_sigma},
        "Dynamic": {"sdf": dynamic_sdf},
    }
    ret = {
        "raw_per_obj_model": {
            "obj0": {"volume_buffer": {"type": "packed"}, "class_name": "Street",
                     "model_id": "street_0"},
            "obj1": {"volume_buffer": {"type": "batched"}, "class_name": "Distant",
                     "model_id": "distant_0"},
            "obj2": {"volume_buffer": {"type": "packed"}, "class_name": "Dynamic",
                     "model_id": "dyn_0"},
            "obj3": {"volume_buffer": {"type": "empty"}, "class_name": "Street",
                     "model_id": "street_1"},
        }
    }
    cfgs = {
        "Street": {"w": 1.0, "key": "sdf",
                   "type": "normalized_logistic_density", "inv_scale": 16.0},
        "Distant": {"w": 0.1, "key": "sigma",
                    "type": "density_reg", "lamb": 0.05},
        "Dynamic": {"w": 0.5, "key": "sdf", "type": "normal", "std": 1.0},
    }

    loss_mod = SparsityLoss(class_name_cfgs=cfgs, enable_after=0)
    losses = loss_mod(ret, uniform_samples, it=100)
    losses = jax.tree_util.tree_map(jax.block_until_ready, losses)

    # pure-JAX reference check (original sigmoid form for nld)
    def ref_nld(x, s):
        sg = jax.nn.sigmoid(s * x)
        return jnp.mean(4.0 * sg * (1.0 - sg))

    ref = {
        "loss_sparsity.Street": 1.0 * ref_nld(street_sdf, 16.0),
        "loss_sparsity.Distant": 0.1 * jnp.mean(jnp.abs(1.0 - jnp.exp(-0.05 * distant_sigma))),
        "loss_sparsity.Dynamic": 0.5 * jnp.mean(jnp.exp(-dynamic_sdf)),
    }
    for name, v in losses.items():
        assert jnp.allclose(v, ref[name], rtol=1e-4, atol=1e-6), (name, v, ref[name])

    # extra check 1: ragged size with the default tile -> single-step grid,
    # lane-row pad + analytic correction + last-block row mask.
    n_rag = 3 * 64 * _LANE_C + 300
    rag = jax.random.normal(k4, (n_rag,), jnp.float32)
    got = jax.block_until_ready(fn_nld(rag, 16.0))
    want = ref_nld(rag, 16.0)
    assert jnp.allclose(got, want, rtol=1e-4, atol=1e-6), (got, want)

    # extra check 2: force a small tile to exercise the multi-step grid with a
    # masked final partial block plus the analytic column-pad correction.
    elem = lambda v: 1.0 - jnp.tanh(8.0 * v) ** 2
    got2 = jax.block_until_ready(
        _mean_of(elem, rag, tile_bytes=64 * _LANE_C * 4))   # 64-row tiles -> 4 steps
    assert jnp.allclose(got2, want, rtol=1e-4, atol=1e-6), (got2, want)

    print("KERNEL_OK")
</pallas_src>

<mosaic_0001>
module attributes {stable_mosaic.version = 11 : i64} {
  func.func @_sum_reduce_kernel(%arg0: i32, %arg1: memref<32x512xf32, #tpu.memory_space<vmem>>, %arg2: memref<1x512xf32, #tpu.memory_space<vmem>>) attributes {dimension_semantics = [#tpu.dimension_semantics<arbitrary>], iteration_bounds = array<i64: 1>, scalar_prefetch = 0 : i64, scratch_operands = 0 : i64, tpu.core_type = #tpu.core_type<tc>, window_params = [{transform_indices = @transform_0, window_bounds = array<i64: 32, 512>}, {pipeline_mode = #tpu.pipeline_mode<synchronous>, transform_indices = @transform_1, window_bounds = array<i64: 1, 512>}]} {
    %c0_i32 = arith.constant 0 : i32
    %0 = arith.cmpi eq, %arg0, %c0_i32 : i32
    %1 = arith.extui %0 : i1 to i32
    %c0_i32_0 = arith.constant 0 : i32
    %2 = arith.cmpi ne, %1, %c0_i32_0 : i32
    scf.if %2 {
      %cst_8 = arith.constant 0.000000e+00 : f32
      %15 = vector.broadcast %cst_8 : f32 to vector<1x512xf32>
      %c0_9 = arith.constant 0 : index
      %c0_10 = arith.constant 0 : index
      %16 = vector.load %arg2[%c0_9, %c0_10] : memref<1x512xf32, #tpu.memory_space<vmem>>, vector<1x512xf32>
      tpu.vector_store %arg2[%c0_9, %c0_10], %15 {strides = array<i32>} : memref<1x512xf32, #tpu.memory_space<vmem>>, vector<1x512xf32>,
    } else {
    }
    %c0 = arith.constant 0 : index
    %c0_1 = arith.constant 0 : index
    %3 = vector.load %arg1[%c0, %c0_1] : memref<32x512xf32, #tpu.memory_space<vmem>>, vector<32x512xf32>
    %cst = arith.constant 8.000000e+00 : f32
    %4 = vector.broadcast %cst : f32 to vector<32x512xf32>
    %5 = arith.mulf %4, %3 : vector<32x512xf32>
    %6 = math.tanh %5 : vector<32x512xf32>
    %7 = arith.mulf %6, %6 : vector<32x512xf32>
    %cst_2 = arith.constant 1.000000e+00 : f32
    %8 = vector.broadcast %cst_2 : f32 to vector<32x512xf32>
    %9 = arith.subf %8, %7 : vector<32x512xf32>
    %c0_3 = arith.constant 0 : index
    %c0_4 = arith.constant 0 : index
    %10 = vector.load %arg2[%c0_3, %c0_4] : memref<1x512xf32, #tpu.memory_space<vmem>>, vector<1x512xf32>
    %cst_5 = arith.constant dense<0.000000e+00> : vector<512xf32>
    %11 = vector.multi_reduction <add>, %9, %cst_5 [0] : vector<32x512xf32> to vector<512xf32>
    %12 = vector.shape_cast %11 : vector<512xf32> to vector<1x512xf32>
    %13 = arith.addf %10, %12 : vector<1x512xf32>
    %c0_6 = arith.constant 0 : index
    %c0_7 = arith.constant 0 : index
    %14 = vector.load %arg2[%c0_6, %c0_7] : memref<1x512xf32, #tpu.memory_space<vmem>>, vector<1x512xf32>
    tpu.vector_store %arg2[%c0_6, %c0_7], %13 {strides = array<i32>} : memref<1x512xf32, #tpu.memory_space<vmem>>, vector<1x512xf32>,
    return
  }
  func.func @transform_0(%arg0: i32) -> (i32, i32) {
    %c0_i32 = arith.constant 0 : i32
    %c0_i32_0 = arith.constant 0 : i32
    return %arg0, %c0_i32 : i32, i32
  }
  func.func @transform_1(%arg0: i32) -> (i32, i32) {
    %c0_i32 = arith.constant 0 : i32
    %c0_i32_0 = arith.constant 0 : i32
    %c0_i32_1 = arith.constant 0 : i32
    return %c0_i32, %c0_i32_0 : i32, i32
  }
}

</mosaic_0001>

<llo_original>
// kernel: tpu_custom_call.1
$region0: #{tpu_custom_call.1}
  #allocation0 [shape = 'u32[]', space=smem, size = 0x4, offset = 0x4, fixed_abs, tag = 'smem constant byte address 0x4 - core index']
  #allocation1 [shape = 'u32[72,128]{1,0:T(1,128)}', space=vmem, size = 0x9000, scoped, tag = 'internal scratch']
  %s0 = inlined_call_operand.hbm [shape: f32[32,512], index: 0, kind: input, shape index: {}]
  %s1 = inlined_call_operand.hbm [shape: f32[1,512], index: 1, kind: output, shape index: {}]
  %s2 = sld [smem:[#allocation0]]
  $region22: #{tpu_custom_call.1} parent=0
    _
  %s4 = ssub.s32 1, %s2
  %s5 = scalar_select 0, %s4, %s2
  $region1: #{tpu_custom_call.1} parent=0
    #allocation2 [shape = 'u8[65536]{0}', space=vmem, size = 0x10000, scoped, tag = 'input window, operand 0, single buffered']
    #allocation3 [shape = 's32[1]{0}', space=sflag, size = 0x4, scoped, tag = 'scoped memory for tpu_custom_call.1']
    #allocation4 [shape = 's32[1]{0}', space=sflag, size = 0x4, scoped, tag = 'scoped memory for tpu_custom_call.1']
    #allocation5 [shape = 'u8[2048]{0}', space=vmem, size = 0x800, scoped, tag = 'output window, operand 0, single buffered']
    %6 = vsyncpa [#allocation3], 0
    %7 = vsyncpa [#allocation4], 0
    // Predicated region
    $region2: #{tpu_custom_call.1} parent=1 // pred_check
      _
    $region3: #{tpu_custom_call.1} parent=1 // pred_check_branch
      %9 = sbr.rel (0) target = $region5
    $region4: #{tpu_custom_call.1} parent=1 // pred_region
      %11 = vsyncadd [#allocation3], 0
      %s12 = sshll.u32 %s0, 4
      %s13 = int_to_ptr.hbm [resolvable:$true] %s12
      %s14 = sshll.u32 [#allocation2], 4
      %s15 = int_to_ptr.vmem [resolvable:$true] %s14
      %20 = dma.hbm_to_vmem [thread:$0]  %s13, 2048, %s15, [#allocation3], 512, 512, 32
    $region5: #{tpu_custom_call.1} parent=1 // pred_fallthru
      _
    // Predicated region
    $region6: #{tpu_custom_call.1} parent=1 // pred_check
      _
    $region7: #{tpu_custom_call.1} parent=1 // pred_check_branch
      %22 = sbr.rel (0) target = $region9
    $region8: #{tpu_custom_call.1} parent=1 // pred_region
      %24 = dma.done [#allocation3], 2048
    $region9: #{tpu_custom_call.1} parent=1 // pred_fallthru
      _
    %p25 = scmp.eq.s32.totalorder 0, 0
    // Predicated region
    $region10: #{tpu_custom_call.1} parent=1 // pred_check
      %p26 = pneg %p25
    $region11: #{tpu_custom_call.1} parent=1 // pred_check_branch
      %28 = sbr.rel (%p26) target = $region13
    $region12: #{tpu_custom_call.1} parent=1 // pred_region
      %v29 = vlaneseq
      %vm30 = vcmp.ge.s32.totalorder %v29, 0
      %vm31 = vcmp.lt.s32.totalorder %v29, 512
      %vm32 = vmand %vm30, %vm31
      %33 = vst.msk [vmem:[#allocation5] sm:$0xf] %vm32, 0.0
    $region13: #{tpu_custom_call.1} parent=1 // pred_fallthru
      _
    %v34 = vld [vmem:[#allocation2] sm:$0xff]
    %v35 = vld [vmem:[#allocation2 + $0x8] sm:$0xff]
    %v36 = vld [vmem:[#allocation2 + $0x10] sm:$0xff]
    %v37 = vld [vmem:[#allocation2 + $0x18] sm:$0xff]
    %v38 = vld [vmem:[#allocation2 + $0x20] sm:$0xff]
    %v39 = vld [vmem:[#allocation2 + $0x28] sm:$0xff]
    %v40 = vld [vmem:[#allocation2 + $0x30] sm:$0xff]
    %v41 = vld [vmem:[#allocation2 + $0x38] sm:$0xff]
    %v42 = vld [vmem:[#allocation2 + $0x40] sm:$0xff]
    %v43 = vld [vmem:[#allocation2 + $0x48] sm:$0xff]
    %v44 = vld [vmem:[#allocation2 + $0x50] sm:$0xff]
    %v45 = vld [vmem:[#allocation2 + $0x58] sm:$0xff]
    %v46 = vld [vmem:[#allocation2 + $0x60] sm:$0xff]
    %v47 = vld [vmem:[#allocation2 + $0x68] sm:$0xff]
    %v48 = vld [vmem:[#allocation2 + $0x70] sm:$0xff]
    %v49 = vld [vmem:[#allocation2 + $0x78] sm:$0xff]
    %v50 = vmul.f32 %v34, 8.0
    %v51 = vmul.f32 %v35, 8.0
    %v52 = vmul.f32 %v36, 8.0
    %v53 = vmul.f32 %v37, 8.0
    %v54 = vmul.f32 %v38, 8.0
    %v55 = vmul.f32 %v39, 8.0
    %v56 = vmul.f32 %v40, 8.0
    %v57 = vmul.f32 %v41, 8.0
    %v58 = vmul.f32 %v42, 8.0
    %v59 = vmul.f32 %v43, 8.0
    %v60 = vmul.f32 %v44, 8.0
    %v61 = vmul.f32 %v45, 8.0
    %v62 = vmul.f32 %v46, 8.0
    %v63 = vmul.f32 %v47, 8.0
    %v64 = vmul.f32 %v48, 8.0
    %v65 = vmul.f32 %v49, 8.0
    %v66 = vtanh.pop %v50
    %v67 = vtanh.pop %v51
    %v68 = vtanh.pop %v52
    %v69 = vtanh.pop %v53
    %v70 = vtanh.pop %v54
    %v71 = vtanh.pop %v55
    %v72 = vtanh.pop %v56
    %v73 = vtanh.pop %v57
    %v74 = vtanh.pop %v58
    %v75 = vtanh.pop %v59
    %v76 = vtanh.pop %v60
    %v77 = vtanh.pop %v61
    %v78 = vtanh.pop %v62
    %v79 = vtanh.pop %v63
    %v80 = vtanh.pop %v64
    %v81 = vtanh.pop %v65
    %v82 = vmul.f32 %v66, %v66
    %v83 = vmul.f32 %v67, %v67
    %v84 = vmul.f32 %v68, %v68
    %v85 = vmul.f32 %v69, %v69
    %v86 = vmul.f32 %v70, %v70
    %v87 = vmul.f32 %v71, %v71
    %v88 = vmul.f32 %v72, %v72
    %v89 = vmul.f32 %v73, %v73
    %v90 = vmul.f32 %v74, %v74
    %v91 = vmul.f32 %v75, %v75
    %v92 = vmul.f32 %v76, %v76
    %v93 = vmul.f32 %v77, %v77
    %v94 = vmul.f32 %v78, %v78
    %v95 = vmul.f32 %v79, %v79
    %v96 = vmul.f32 %v80, %v80
    %v97 = vmul.f32 %v81, %v81
    %v98 = vsub.f32 1.0, %v82
    %v99 = vsub.f32 1.0, %v83
    %v100 = vsub.f32 1.0, %v84
    %v101 = vsub.f32 1.0, %v85
    %v102 = vsub.f32 1.0, %v86
    %v103 = vsub.f32 1.0, %v87
    %v104 = vsub.f32 1.0, %v88
    %v105 = vsub.f32 1.0, %v89
    %v106 = vsub.f32 1.0, %v90
    %v107 = vsub.f32 1.0, %v91
    %v108 = vsub.f32 1.0, %v92
    %v109 = vsub.f32 1.0, %v93
    %v110 = vsub.f32 1.0, %v94
    %v111 = vsub.f32 1.0, %v95
    %v112 = vsub.f32 1.0, %v96
    %v113 = vsub.f32 1.0, %v97
    %v114 = vld [vmem:[#allocation5] sm:$0xf]
    %v115 = vadd.f32 %v98, %v102
    %v116 = vadd.f32 %v115, %v106
    %v117 = vadd.f32 %v116, %v110
    %v118 = vrot.slane %v117, 4
    %v119 = vadd.f32 %v117, %v118
    %v120 = vrot.slane %v119, 2
    %v121 = vadd.f32 %v119, %v120
    %v122 = vrot.slane %v121, 1
    %v123 = vadd.f32 %v121, %v122
    %v124 = vadd.f32 %v99, %v103
    %v125 = vadd.f32 %v124, %v107
    %v126 = vadd.f32 %v125, %v111
    %v127 = vrot.slane %v126, 4
    %v128 = vadd.f32 %v126, %v127
    %v129 = vrot.slane %v128, 2
    %v130 = vadd.f32 %v128, %v129
    %v131 = vrot.slane %v130, 1
    %v132 = vadd.f32 %v130, %v131
    %v133 = vadd.f32 %v100, %v104
    %v134 = vadd.f32 %v133, %v108
    %v135 = vadd.f32 %v134, %v112
    %v136 = vrot.slane %v135, 4
    %v137 = vadd.f32 %v135, %v136
    %v138 = vrot.slane %v137, 2
    %v139 = vadd.f32 %v137, %v138
    %v140 = vrot.slane %v139, 1
    %v141 = vadd.f32 %v139, %v140
    %v142 = vadd.f32 %v101, %v105
    %v143 = vadd.f32 %v142, %v109
    %v144 = vadd.f32 %v143, %v113
    %v145 = vrot.slane %v144, 4
    %v146 = vadd.f32 %v144, %v145
    %v147 = vrot.slane %v146, 2
    %v148 = vadd.f32 %v146, %v147
    %v149 = vrot.slane %v148, 1
    %v150 = vadd.f32 %v148, %v149
    %v155 = vrot.slane %v132, 7
    %v156 = vrot.slane %v141, 6
    %v157 = vrot.slane %v150, 5
    %vm158 = vcmask 1040384
    %v159 = vsel %vm158, %v123, %v155
    %vm160 = vcmask 1042434
    %v161 = vsel %vm160, %v156, %v157
    %vm162 = vcmask 1041408
    %v163 = vsel %vm162, %v159, %v161
    %v165 = vadd.f32 %v114, %v163
    %v166 = vlaneseq
    %vm167 = vcmp.ge.s32.totalorder %v166, 0
    %vm168 = vcmp.lt.s32.totalorder %v166, 512
    %vm169 = vmand %vm167, %vm168
    %170 = vst.msk [vmem:[#allocation5] sm:$0xf] %vm169, %v165
    // Predicated region
    $region14: #{tpu_custom_call.1} parent=1 // pred_check
      _
    $region15: #{tpu_custom_call.1} parent=1 // pred_check_branch
      %172 = sbr.rel (0) target = $region17
    $region16: #{tpu_custom_call.1} parent=1 // pred_region
      %174 = vsyncadd [#allocation4], 0
      %s176 = sshll.u32 [#allocation5], 4
      %s177 = int_to_ptr.vmem [resolvable:$true] %s176
      %s178 = sshll.u32 %s1, 4
      %s179 = int_to_ptr.hbm [resolvable:$true] %s178
      %181 = dma.vmem_to_hbm [thread:$0]  %s177, 64, %s179, [#allocation4]
    $region17: #{tpu_custom_call.1} parent=1 // pred_fallthru
      _
    // Predicated region
    $region18: #{tpu_custom_call.1} parent=1 // pred_check
      _
    $region19: #{tpu_custom_call.1} parent=1 // pred_check_branch
      %183 = sbr.rel (0) target = $region21
    $region20: #{tpu_custom_call.1} parent=1 // pred_region
      %185 = dma.done [#allocation4], 64
    $region21: #{tpu_custom_call.1} parent=1 // pred_fallthru
      _
    %186 = vsyncpa [#allocation3], 1
    %187 = vsyncpa [#allocation4], 1

</llo_original>
